<compile_context>
chip_gen: v7x
topology: tpu7x:2x2x1
jax: 0.10.0
libtpu: 0.0.40
codegen_flags: <defaults>
</compile_context>

<pallas_src>
import math

import jax
import jax.numpy as jnp
from jax.experimental import pallas as pl
from jax.experimental.pallas import tpu as pltpu

LANE = 128
SUBLANE = 8


def _round_up(n, m):
    return ((n + m - 1) // m) * m


def _linear_nobias_kernel(x_ref, w_ref, o_ref):
    # x_ref: (tm, K), w_ref: (K, N)  ->  o_ref: (tm, N); f32 accumulation on MXU.
    o_ref[...] = jnp.dot(
        x_ref[...], w_ref[...], preferred_element_type=jnp.float32
    ).astype(o_ref.dtype)


def _vmem_cap_bytes():
    # Generation-aware scoped-VMEM cap: half of physical, capped at 64 MiB.
    #   v5e/v6e (128 MiB physical) -> 64 MiB ; v7x (64 MiB per TC) -> 32 MiB.
    phys = 64 * 1024 * 1024  # conservative default if the query fails
    try:
        info = pltpu.get_tpu_info()
        phys = int(getattr(info, "vmem_capacity_bytes", phys))
    except Exception:
        pass
    return min(phys // 2, 64 * 1024 * 1024)


def time_feature_embedding(x, weight, *, tm_max=8192):
    """x: (B, L, d_inp); weight: (d_model, d_inp) (torch nn.Linear layout)."""
    B, L, d_inp = x.shape
    d_model = weight.shape[0]
    M = B * L
    itemsize = jnp.dtype(x.dtype).itemsize

    # ---- lane-dense output via row folding (no padding, no slice copy) ------
    # Smallest r such that (r * d_model) % 128 == 0.
    r = LANE // math.gcd(d_model, LANE)
    w_t = weight.T  # (d_inp, d_model): canonical (K, N) RHS for the MXU
    fold = (
        r > 1
        and M % r == 0
        and (r * d_inp) * (r * d_model) * itemsize <= 4 * 1024 * 1024
    )
    if fold:
        K = r * d_inp
        N = r * d_model
        x2d = x.reshape(M // r, K)  # free row-major reshape (fold r rows -> lanes)
        # One-time block-diagonal weight: row j of a fold hits cols [j*d_model, ...).
        w2d = jnp.kron(jnp.eye(r, dtype=w_t.dtype), w_t)  # (K, N)
        M_rows = M // r
    else:
        # d_model already fills 128 lanes, or M does not fold: emit the
        # unpadded (M, d_model) output (masked stores at worst, minimal bytes).
        K = d_inp
        N = d_model
        x2d = x.reshape(M, K)
        w2d = w_t
        M_rows = M

    # ---- tile sizing: VMEM-budgeted, and >= 4 tiles when M is big enough ----
    vmem_cap = _vmem_cap_bytes()
    # (8,128)-tiled VMEM footprints (double-buffered x and out tiles + weight).
    per_row_bytes = 2 * itemsize * (_round_up(K, LANE) + _round_up(N, LANE))
    w_bytes = 2 * _round_up(K, SUBLANE) * _round_up(N, LANE) * itemsize
    budget = int(0.75 * vmem_cap) - w_bytes
    tm_budget = max(SUBLANE, (budget // per_row_bytes) // SUBLANE * SUBLANE)
    tm_target = min(tm_max, tm_budget)

    min_tiles = 4  # 2 TensorCores (v7x) x 2 pipeline stages
    tm = min(tm_target, _round_up(pl.cdiv(M_rows, min_tiles), SUBLANE))
    if tm >= M_rows:
        tm = M_rows  # single block; block dim == full array dim is always legal
    grid_m = pl.cdiv(M_rows, tm)

    vmem_bytes = (
        2 * _round_up(tm, SUBLANE) * _round_up(K, LANE) * itemsize
        + 2 * _round_up(tm, SUBLANE) * _round_up(N, LANE) * itemsize
        + w_bytes
    )
    vmem_limit = min(max(2 * vmem_bytes, 16 * 1024 * 1024), vmem_cap)

    cost = pl.CostEstimate(
        flops=2 * M_rows * K * N,
        transcendentals=0,
        bytes_accessed=itemsize * (M_rows * K + K * N + M_rows * N),
    )

    out = pl.pallas_call(
        _linear_nobias_kernel,
        out_shape=jax.ShapeDtypeStruct((M_rows, N), x.dtype),
        grid_spec=pltpu.PrefetchScalarGridSpec(
            num_scalar_prefetch=0,
            grid=(grid_m,),
            in_specs=[
                pl.BlockSpec((tm, K), lambda i: (i, 0)),
                pl.BlockSpec((K, N), lambda i: (0, 0)),  # VMEM-resident weight
            ],
            out_specs=pl.BlockSpec((tm, N), lambda i: (i, 0)),
        ),
        compiler_params=pltpu.CompilerParams(
            dimension_semantics=("parallel",),  # shard M-tiles across TCs
            vmem_limit_bytes=vmem_limit,
        ),
        cost_estimate=cost,
    )(x2d, w2d)

    # Free row-major reshape back to (B, L, d_model); correct for both the
    # folded (M/r, r*d_model) and unfolded (M, d_model) layouts.
    return out.reshape(B, L, d_model)


def _bf16_grid(a):
    # Snap test inputs to bf16-representable values so the check is insensitive
    # to the MXU's f32-matmul pass count (products become exact; only f32
    # accumulation-order noise remains).
    return a.astype(jnp.bfloat16).astype(jnp.float32)


if __name__ == "__main__":
    key = jax.random.PRNGKey(0)

    # ---- case 1: freq='h' -> d_inp=4, d_model=32 (exercises the row fold) ----
    d_inp, d_model, B, L = 4, 32, 2, 8
    kx, kw, key = jax.random.split(key, 3)
    x = _bf16_grid(jax.random.normal(kx, (B, L, d_inp), dtype=jnp.float32))
    bound = 1.0 / (d_inp ** 0.5)
    weight = _bf16_grid(
        jax.random.uniform(kw, (d_model, d_inp), dtype=jnp.float32,
                           minval=-bound, maxval=bound)
    )
    y = jax.block_until_ready(time_feature_embedding(x, weight))
    y_ref = jnp.einsum("bld,md->blm", x, weight)
    assert y.shape == (B, L, d_model)
    assert jnp.allclose(y, y_ref, atol=1e-5, rtol=1e-5)

    # ---- case 2: freq='t' -> d_inp=5, ragged M (exercises fallback + cdiv grid) ----
    d_inp2, d_model2, B2, L2 = 5, 32, 3, 37
    kx2, kw2, key = jax.random.split(key, 3)
    x2 = _bf16_grid(jax.random.normal(kx2, (B2, L2, d_inp2), dtype=jnp.float32))
    bound2 = 1.0 / (d_inp2 ** 0.5)
    weight2 = _bf16_grid(
        jax.random.uniform(kw2, (d_model2, d_inp2), dtype=jnp.float32,
                           minval=-bound2, maxval=bound2)
    )
    y2 = jax.block_until_ready(time_feature_embedding(x2, weight2))
    y2_ref = jnp.einsum("bld,md->blm", x2, weight2)
    assert y2.shape == (B2, L2, d_model2)
    assert jnp.allclose(y2, y2_ref, atol=1e-5, rtol=1e-5)

    print("KERNEL_OK")
</pallas_src>

<mosaic_0001>
module attributes {stable_mosaic.version = 11 : i64} {
  func.func @_linear_nobias_kernel(%arg0: i32, %arg1: memref<4x16xf32, #tpu.memory_space<vmem>>, %arg2: memref<16x128xf32, #tpu.memory_space<vmem>>, %arg3: memref<4x128xf32, #tpu.memory_space<vmem>>) attributes {dimension_semantics = [#tpu.dimension_semantics<parallel>], iteration_bounds = array<i64: 1>, scalar_prefetch = 0 : i64, scratch_operands = 0 : i64, tpu.core_type = #tpu.core_type<tc>, window_params = [{transform_indices = @transform_0, window_bounds = array<i64: 4, 16>}, {pipeline_mode = #tpu.pipeline_mode<synchronous>, transform_indices = @transform_1, window_bounds = array<i64: 16, 128>}, {transform_indices = @transform_2, window_bounds = array<i64: 4, 128>}]} {
    %c0 = arith.constant 0 : index
    %c0_0 = arith.constant 0 : index
    %0 = vector.load %arg1[%c0, %c0_0] : memref<4x16xf32, #tpu.memory_space<vmem>>, vector<4x16xf32>
    %c0_1 = arith.constant 0 : index
    %c0_2 = arith.constant 0 : index
    %1 = vector.load %arg2[%c0_1, %c0_2] : memref<16x128xf32, #tpu.memory_space<vmem>>, vector<16x128xf32>
    %cst = arith.constant dense<0.000000e+00> : vector<4x128xf32>
    %2 = tpu.matmul %0, %1, %cst {dimension_numbers = #tpu.dot_dimension_numbers<[1], [0], [0], [1], [0, 0, 1, 1], [], []>} : vector<4x16xf32>, vector<16x128xf32>, vector<4x128xf32> -> vector<4x128xf32>
    %c0_3 = arith.constant 0 : index
    %c0_4 = arith.constant 0 : index
    %3 = vector.load %arg3[%c0_3, %c0_4] : memref<4x128xf32, #tpu.memory_space<vmem>>, vector<4x128xf32>
    tpu.vector_store %arg3[%c0_3, %c0_4], %2 {strides = array<i32>} : memref<4x128xf32, #tpu.memory_space<vmem>>, vector<4x128xf32>,
    return
  }
  func.func @transform_0(%arg0: i32) -> (i32, i32) {
    %c0_i32 = arith.constant 0 : i32
    %c0_i32_0 = arith.constant 0 : i32
    return %arg0, %c0_i32 : i32, i32
  }
  func.func @transform_1(%arg0: i32) -> (i32, i32) {
    %c0_i32 = arith.constant 0 : i32
    %c0_i32_0 = arith.constant 0 : i32
    %c0_i32_1 = arith.constant 0 : i32
    return %c0_i32, %c0_i32_0 : i32, i32
  }
  func.func @transform_2(%arg0: i32) -> (i32, i32) {
    %c0_i32 = arith.constant 0 : i32
    %c0_i32_0 = arith.constant 0 : i32
    return %arg0, %c0_i32 : i32, i32
  }
}

</mosaic_0001>

<llo_original>
// kernel: tpu_custom_call.1
$region0: #{tpu_custom_call.1}
  #allocation0 [shape = 'u32[]', space=smem, size = 0x4, offset = 0x4, fixed_abs, tag = 'smem constant byte address 0x4 - core index']
  #allocation1 [shape = 'u32[144,128]{1,0:T(1,128)}', space=vmem, size = 0x12000, scoped, tag = 'internal scratch']
  %s0 = inlined_call_operand.hbm [shape: f32[4,16], index: 0, kind: input, shape index: {}]
  %s1 = inlined_call_operand.hbm [shape: f32[16,128], index: 1, kind: input, shape index: {}]
  %s2 = inlined_call_operand.hbm [shape: f32[4,128], index: 2, kind: output, shape index: {}]
  %s3 = sld [smem:[#allocation0]]
  $region26: #{tpu_custom_call.1} parent=0
    _
  %s5 = ssub.s32 1, %s3
  %s6 = scalar_select 0, %s5, %s3
  $region1: #{tpu_custom_call.1} parent=0
    #allocation2 [shape = 'u8[2048]{0}', space=vmem, size = 0x800, scoped, tag = 'input window, operand 0, single buffered']
    #allocation3 [shape = 's32[1]{0}', space=sflag, size = 0x4, scoped, tag = 'scoped memory for tpu_custom_call.1']
    #allocation4 [shape = 's32[1]{0}', space=sflag, size = 0x4, scoped, tag = 'scoped memory for tpu_custom_call.1']
    #allocation5 [shape = 'u8[8192]{0}', space=vmem, size = 0x2000, scoped, tag = 'input window, operand 1, single buffered']
    #allocation6 [shape = 's32[1]{0}', space=sflag, size = 0x4, scoped, tag = 'scoped memory for tpu_custom_call.1']
    #allocation7 [shape = 'u8[2048]{0}', space=vmem, size = 0x800, scoped, tag = 'output window, operand 0, single buffered']
    %7 = vsyncpa [#allocation3], 0
    %8 = vsyncpa [#allocation6], 0
    %9 = vsyncpa [#allocation4], 0
    // Predicated region
    $region2: #{tpu_custom_call.1} parent=1 // pred_check
      _
    $region3: #{tpu_custom_call.1} parent=1 // pred_check_branch
      %11 = sbr.rel (0) target = $region5
    $region4: #{tpu_custom_call.1} parent=1 // pred_region
      %s13 = ssub.s32 64, 64
      %14 = vsyncadd [#allocation3], %s13
      %s16 = sshll.u32 [#allocation2], 4
      %s17 = int_to_ptr.vmem [resolvable:$true] %s16
      %19 = dma.hbm_to_vmem [thread:$0]  %s0, 64, %s17, [#allocation3]
    $region5: #{tpu_custom_call.1} parent=1 // pred_fallthru
      _
    // Predicated region
    $region6: #{tpu_custom_call.1} parent=1 // pred_check
      _
    $region7: #{tpu_custom_call.1} parent=1 // pred_check_branch
      %21 = sbr.rel (0) target = $region9
    $region8: #{tpu_custom_call.1} parent=1 // pred_region
      %s23 = ssub.s32 256, 256
      %24 = vsyncadd [#allocation6], %s23
      %s25 = sshll.u32 [#allocation5], 4
      %s26 = int_to_ptr.vmem [resolvable:$true] %s25
      %31 = dma.hbm_to_vmem [thread:$0]  %s1, 256, %s26, [#allocation6], 128, 128, 8
    $region9: #{tpu_custom_call.1} parent=1 // pred_fallthru
      _
    // Predicated region
    $region10: #{tpu_custom_call.1} parent=1 // pred_check
      _
    $region11: #{tpu_custom_call.1} parent=1 // pred_check_branch
      %33 = sbr.rel (0) target = $region13
    $region12: #{tpu_custom_call.1} parent=1 // pred_region
      %34 = dma.done [#allocation3], 64
    $region13: #{tpu_custom_call.1} parent=1 // pred_fallthru
      _
    // Predicated region
    $region14: #{tpu_custom_call.1} parent=1 // pred_check
      _
    $region15: #{tpu_custom_call.1} parent=1 // pred_check_branch
      %36 = sbr.rel (0) target = $region17
    $region16: #{tpu_custom_call.1} parent=1 // pred_region
      %37 = dma.done [#allocation6], 256
    $region17: #{tpu_custom_call.1} parent=1 // pred_fallthru
      _
    %v38 = vld [vmem:[#allocation2] sm:$0xf]
    %v39 = vld [vmem:[#allocation5] sm:$0xff]
    %v40 = vld [vmem:[#allocation5 + $0x8] sm:$0xff]
    %vm41 = vcmask 130048
    %v43 = vsel %vm41, %v38, 0
    %45 = vmatprep.subr.mxu0 0.0
    %46 = vmatpush1.msra.mxu0 %v39
    %47 = vmatprep.subr.mxu0 0.0
    %48 = vmatpush1.msra.mxu0 %v40
    %49 = vmatprep.subr.mxu0 0.0
    %50 = vmatpush1.msra.mxu0 0.0
    %51 = vmatprep.subr.mxu0 0.0
    %52 = vmatpush1.msra.mxu0 0.0
    %53 = vmatprep.subr.mxu0 0.0
    %54 = vmatpush1.msra.mxu0 0.0
    %55 = vmatprep.subr.mxu0 0.0
    %56 = vmatpush1.msra.mxu0 0.0
    %57 = vmatprep.subr.mxu0 0.0
    %58 = vmatpush1.msra.mxu0 0.0
    %59 = vmatprep.subr.mxu0 0.0
    %60 = vmatpush1.msra.mxu0 0.0
    %61 = vmatprep.subr.mxu0 0.0
    %62 = vmatpush1.msra.mxu0 0.0
    %63 = vmatprep.subr.mxu0 0.0
    %64 = vmatpush1.msra.mxu0 0.0
    %65 = vmatprep.subr.mxu0 0.0
    %66 = vmatpush1.msra.mxu0 0.0
    %67 = vmatprep.subr.mxu0 0.0
    %68 = vmatpush1.msra.mxu0 0.0
    %69 = vmatprep.subr.mxu0 0.0
    %70 = vmatpush1.msra.mxu0 0.0
    %71 = vmatprep.subr.mxu0 0.0
    %72 = vmatpush1.msra.mxu0 0.0
    %73 = vmatprep.subr.mxu0 0.0
    %74 = vmatpush1.msra.mxu0 0.0
    %75 = vmatprep.subr.mxu0 0.0
    %76 = vmatpush1.msra.mxu0 0.0
    %77 = vmatprep.subr.mxu0 0.0
    %78 = vmatpush1.msra.mxu0 0.0
    %79 = vmatprep.subr.mxu0 0.0
    %80 = vmatpush1.msra.mxu0 0.0
    %81 = vmatprep.subr.mxu0 0.0
    %82 = vmatpush1.msra.mxu0 0.0
    %83 = vmatprep.subr.mxu0 0.0
    %84 = vmatpush1.msra.mxu0 0.0
    %85 = vmatprep.subr.mxu0 0.0
    %86 = vmatpush1.msra.mxu0 0.0
    %87 = vmatprep.subr.mxu0 0.0
    %88 = vmatpush1.msra.mxu0 0.0
    %89 = vmatprep.subr.mxu0 0.0
    %90 = vmatpush1.msra.mxu0 0.0
    %91 = vmatprep.subr.mxu0 0.0
    %92 = vmatpush1.msra.mxu0 0.0
    %93 = vmatprep.subr.mxu0 0.0
    %94 = vmatpush1.msra.mxu0 0.0
    %95 = vmatprep.subr.mxu0 0.0
    %96 = vmatpush1.msra.mxu0 0.0
    %97 = vmatprep.subr.mxu0 0.0
    %98 = vmatpush1.msra.mxu0 0.0
    %99 = vmatprep.subr.mxu0 0.0
    %100 = vmatpush1.msra.mxu0 0.0
    %101 = vmatprep.subr.mxu0 0.0
    %102 = vmatpush1.msra.mxu0 0.0
    %103 = vmatprep.subr.mxu0 0.0
    %104 = vmatpush1.msra.mxu0 0.0
    %105 = vmatprep.subr.mxu0 0.0
    %106 = vmatpush1.msra.mxu0 0.0
    %107 = vmatprep.subr.mxu0 0.0
    %108 = vmatpush1.msra.mxu0 0.0
    %109 = vmatprep.mubr.f32.mxu0 0.0
    %110 = vmatmul.mubr.f32.gmra.mrb[0].mxu0 %v43
    %v111 = vpop.f32.mrb[0].mxu0
    %v112 = vadd.f32 0.0, %v111
    %v113 = vpop.f32.mrb[0].mxu0
    %114 = vdwg.mxu0
    %115 = vst [vmem:[#allocation7] sm:$0xf] %v112
    // Predicated region
    $region18: #{tpu_custom_call.1} parent=1 // pred_check
      _
    $region19: #{tpu_custom_call.1} parent=1 // pred_check_branch
      %117 = sbr.rel (0) target = $region21
    $region20: #{tpu_custom_call.1} parent=1 // pred_region
      %s119 = ssub.s32 64, 64
      %120 = vsyncadd [#allocation4], %s119
      %s122 = sshll.u32 [#allocation7], 4
      %s123 = int_to_ptr.vmem [resolvable:$true] %s122
      %125 = dma.vmem_to_hbm [thread:$0]  %s123, 64, %s2, [#allocation4]
    $region21: #{tpu_custom_call.1} parent=1 // pred_fallthru
      _
    // Predicated region
    $region22: #{tpu_custom_call.1} parent=1 // pred_check
      _
    $region23: #{tpu_custom_call.1} parent=1 // pred_check_branch
      %127 = sbr.rel (0) target = $region25
    $region24: #{tpu_custom_call.1} parent=1 // pred_region
      %128 = dma.done [#allocation4], 64
    $region25: #{tpu_custom_call.1} parent=1 // pred_fallthru
      _
    %129 = vsyncpa [#allocation3], 1
    %130 = vsyncpa [#allocation6], 1
    %131 = vsyncpa [#allocation4], 1

</llo_original>
